<compile_context>
chip_gen: v6e
topology: v6e:2x2x1
jax: 0.10.0
libtpu: 0.0.40
codegen_flags: <defaults>
</compile_context>

<pallas_src>
import jax
import jax.numpy as jnp
from jax import lax
from jax.experimental import pallas as pl
from jax.experimental.pallas import tpu as pltpu

_SUBLANE = 8
_LANE = 128


def _vmem_capacity_bytes() -> int:
    """Per-core VMEM capacity; conservative fallback if the query is unavailable."""
    try:
        cap = getattr(pltpu.get_tpu_info(), "vmem_capacity_bytes", None)
        if cap:
            return int(cap)
    except Exception:
        pass
    return 64 * 1024 * 1024  # v7x per-TensorCore VMEM (smallest of v5e/v6e/v7x)


def _num_tensorcores() -> int:
    """TensorCores per chip (v7x: 2).  Conservative fallback = 1 (v5e/v6e)."""
    try:
        info = pltpu.get_tpu_info()
        for name in ("num_cores", "core_count", "num_tensorcores", "tensor_core_count"):
            v = getattr(info, name, None)
            if v:
                return max(1, int(v))
    except Exception:
        pass
    return 1


def _pick_tile_rows(batch, n_classes, in_itemsize, vmem_limit, f32_temps):
    """Largest row tile that fits VMEM, accounting for pipeline buffers AND f32 temps,
    capped by a per-input-per-buffer byte target (multi-MiB tiles hit ~85% of the HBM
    roofline; bigger only adds VMEM pressure)."""
    if batch <= _SUBLANE:
        return batch  # block equals the full batch dim -> no (8,) divisibility needed
    # live bytes per tile row: 2 inputs x 2 pipeline buffers of the wire dtype
    # + f32 in-kernel temporaries (current tile only) + resident accumulator lanes
    per_row = n_classes * (4 * in_itemsize + 4 * f32_temps) + 2 * _LANE * 4
    budget_rows = max(_SUBLANE, int(vmem_limit * 0.7) // max(per_row, 1))
    tile_target = (2 * 1024 * 1024 if _vmem_capacity_bytes() <= 64 * 1024 * 1024
                   else 4 * 1024 * 1024)
    cap_rows = max(_SUBLANE, tile_target // max(n_classes * in_itemsize, 1))
    tb = min(batch, budget_rows, cap_rows)
    return max(_SUBLANE, (tb // _SUBLANE) * _SUBLANE)


# ---------------- per-element contributions (f32) ----------------

def _kl_elem(x, t):
    """Per-element t * (log t - log_softmax(x)); t<=0 contributes 0 (xlogy semantics)."""
    m = jnp.max(x, axis=1, keepdims=True)                       # stable log_softmax
    lse = jnp.log(jnp.sum(jnp.exp(x - m), axis=1, keepdims=True)) + m
    logp = x - lse
    safe_t = jnp.where(t > 0, t, 1.0)
    return jnp.where(t > 0, t * (jnp.log(safe_t) - logp), 0.0)


def _mse_elem(x, t):
    d = x - t
    return d * d


def _make_loss_kernel(elem_fn, tile_rows, n_cols, blocks_per_split, n_valid_rows,
                      lane_fold):
    def kernel(pred_ref, true_ref, out_ref):
        c = pl.program_id(0)   # shard (CORE_PARALLEL on multi-TC chips)
        s = pl.program_id(1)   # reduction step within the shard ("arbitrary")

        @pl.when(s == 0)
        def _init():
            out_ref[...] = jnp.zeros_like(out_ref)

        x = pred_ref[...].astype(jnp.float32)
        t = true_ref[...].astype(jnp.float32)
        e = elem_fn(x, t)                                   # (tile_rows, n_cols) f32

        if lane_fold:
            # Fold the C/128 lane groups with pure VPU adds -> per-lane partial that is
            # accumulated elementwise into the resident output block (no per-step
            # cross-lane XLU reduce, better f32 accumulation accuracy).
            part = e[:, :_LANE]
            for j in range(1, n_cols // _LANE):
                part = part + e[:, j * _LANE:(j + 1) * _LANE]

        linear_block = c * blocks_per_split + s
        row0 = linear_block * tile_rows
        is_clean = row0 + tile_rows <= n_valid_rows         # tile has no padded rows

        @pl.when(is_clean)
        def _acc_clean():
            if lane_fold:
                out_ref[...] += part
            else:
                out_ref[...] += jnp.sum(e)                  # scalar broadcast-add

        @pl.when(jnp.logical_not(is_clean))
        def _acc_edge():
            rows = row0 + lax.broadcasted_iota(jnp.int32, (tile_rows, 1), 0)
            valid = rows < n_valid_rows                     # (tile_rows, 1)
            if lane_fold:
                out_ref[...] += jnp.where(valid, part, 0.0)
            else:
                out_ref[...] += jnp.sum(jnp.where(valid, e, 0.0))

    return kernel


def _reduce_loss(elem_fn, f32_temps, y_pred, y_true, denom, tile_rows=None):
    assert y_pred.shape == y_true.shape and y_pred.ndim == 2
    B, C = y_pred.shape
    itemsize = max(jnp.dtype(y_pred.dtype).itemsize, jnp.dtype(y_true.dtype).itemsize)

    vmem_cap = _vmem_capacity_bytes()
    vmem_limit = min(3 * vmem_cap // 4, 96 * 1024 * 1024)

    if tile_rows is None:
        tb = _pick_tile_rows(B, C, itemsize, vmem_limit, f32_temps)
    else:  # sanitize explicit tile size to satisfy the (8, lane) blocking rule
        tb = B if B <= _SUBLANE else max(_SUBLANE, (min(tile_rows, B) // _SUBLANE) * _SUBLANE)

    n_blocks = pl.cdiv(B, tb)
    # Multi-split only pays off with >1 TensorCore; on 1-TC chips it would just re-DMA
    # a clamped, fully-masked tile.
    n_split = max(1, min(_num_tensorcores(), 2, n_blocks))
    bps = pl.cdiv(n_blocks, n_split)   # reduction steps per shard

    lane_fold = (tb % _SUBLANE == 0) and (C % _LANE == 0) and C >= _LANE
    out_rows = tb if lane_fold else _SUBLANE

    kernel = _make_loss_kernel(elem_fn, tb, C, bps, B, lane_fold)

    def in_map(c, s):
        # Overflow steps (n_blocks not a multiple of n_split) clamp to a valid block;
        # their rows are fully masked in the kernel (at most one wasted tile, n_split<=2).
        return (jnp.minimum(c * bps + s, n_blocks - 1), 0)

    def call(dim_sems):
        return pl.pallas_call(
            kernel,
            out_shape=jax.ShapeDtypeStruct((n_split * out_rows, _LANE), jnp.float32),
            grid=(n_split, bps),
            in_specs=[
                pl.BlockSpec((tb, C), in_map),
                pl.BlockSpec((tb, C), in_map),
            ],
            out_specs=pl.BlockSpec((out_rows, _LANE), lambda c, s: (c, 0)),
            compiler_params=pltpu.CompilerParams(
                dimension_semantics=dim_sems,
                vmem_limit_bytes=vmem_limit,
            ),
        )(y_pred, y_true)

    if n_split > 1:
        try:
            # Genuinely shard the split axis across TensorCores (v7x megacore).
            out = call((pltpu.CORE_PARALLEL, pltpu.ARBITRARY))
        except Exception:
            out = call(("parallel", "arbitrary"))
    else:
        out = call(("arbitrary", "arbitrary"))

    if lane_fold:
        total = jnp.sum(out)                                   # single cross-lane reduce
    else:
        total = jnp.sum(out.reshape(n_split, _SUBLANE, _LANE)[:, 0, 0])
    return total * jnp.float32(1.0 / denom)


class MyLossPallas:
    """Mirror of the PyTorch MyLoss; `pretrain` selects MSE vs KLDiv(batchmean)."""

    def __init__(self, pretrain: bool, tile_rows=None):
        self.pretrain = pretrain
        self.tile_rows = tile_rows

    def __call__(self, y_pred, y_true):
        return_dict = {}
        if self.pretrain:
            yp, yt = y_pred, y_true
            if yp.ndim == 1:
                yp, yt = yp.reshape(1, -1), yt.reshape(1, -1)
            elif yp.ndim > 2:
                yp = yp.reshape(-1, yp.shape[-1])
                yt = yt.reshape(-1, yt.shape[-1])
            n_elems = yp.shape[0] * yp.shape[1]
            return_dict["loss"] = _reduce_loss(_mse_elem, 2, yp, yt, n_elems, self.tile_rows)
        else:
            # fused log_softmax(dim=1) + KLDiv(batchmean); divide by original batch size
            yp, yt = y_pred, y_true
            denom = yp.shape[0]
            if yp.ndim > 2:  # softmax over dim=1; move classes last and flatten rows
                yp = jnp.moveaxis(yp, 1, -1).reshape(-1, y_pred.shape[1])
                yt = jnp.moveaxis(yt, 1, -1).reshape(-1, y_true.shape[1])
            return_dict["loss"] = _reduce_loss(_kl_elem, 4, yp, yt, denom, self.tile_rows)
        return return_dict


if __name__ == "__main__":
    key = jax.random.PRNGKey(0)
    k1, k2 = jax.random.split(key)

    B, C = 50, 128  # small; batch deliberately not a multiple of the tile (edge masking)
    y_pred = jax.random.normal(k1, (B, C), dtype=jnp.float32)          # logits
    y_true = jax.nn.softmax(jax.random.normal(k2, (B, C)), axis=1)     # target probs

    # pure-JAX references
    logp_ref = jax.nn.log_softmax(y_pred, axis=1)
    kl_ref = jnp.sum(jnp.where(
        y_true > 0,
        y_true * (jnp.log(jnp.where(y_true > 0, y_true, 1.0)) - logp_ref),
        0.0)) / B
    mse_ref = jnp.mean((y_pred - y_true) ** 2)

    # multi-step accumulation path (several blocks per shard) ...
    kl_small = MyLossPallas(pretrain=False, tile_rows=16)(y_pred, y_true)["loss"]
    mse_small = MyLossPallas(pretrain=True, tile_rows=16)(y_pred, y_true)["loss"]
    # ... and the default auto-sized tiling
    kl_auto = MyLossPallas(pretrain=False)(y_pred, y_true)["loss"]
    mse_auto = MyLossPallas(pretrain=True)(y_pred, y_true)["loss"]
    jax.block_until_ready((kl_small, mse_small, kl_auto, mse_auto))

    assert jnp.allclose(kl_small, kl_ref, atol=1e-5, rtol=1e-5)
    assert jnp.allclose(kl_auto, kl_ref, atol=1e-5, rtol=1e-5)
    assert jnp.allclose(mse_small, mse_ref, atol=1e-5, rtol=1e-5)
    assert jnp.allclose(mse_auto, mse_ref, atol=1e-5, rtol=1e-5)

    # bf16 inputs (recommended: the kernel is HBM-bandwidth bound); f32 compute in-kernel
    yp_bf, yt_bf = y_pred.astype(jnp.bfloat16), y_true.astype(jnp.bfloat16)
    kl_bf = MyLossPallas(pretrain=False, tile_rows=16)(yp_bf, yt_bf)["loss"]
    jax.block_until_ready(kl_bf)
    t_bf = yt_bf.astype(jnp.float32)
    logp_bf = jax.nn.log_softmax(yp_bf.astype(jnp.float32), axis=1)
    kl_bf_ref = jnp.sum(jnp.where(
        t_bf > 0, t_bf * (jnp.log(jnp.where(t_bf > 0, t_bf, 1.0)) - logp_bf), 0.0)) / B
    assert jnp.allclose(kl_bf, kl_bf_ref, atol=1e-4, rtol=1e-4)

    print("KERNEL_OK")
</pallas_src>

<mosaic_0001>
module attributes {stable_mosaic.version = 11 : i64} {
  func.func @kernel(%arg0: i32, %arg1: i32, %arg2: memref<16x128xf32, #tpu.memory_space<vmem>>, %arg3: memref<16x128xf32, #tpu.memory_space<vmem>>, %arg4: memref<16x128xf32, #tpu.memory_space<vmem>>) attributes {dimension_semantics = [#tpu.dimension_semantics<arbitrary>, #tpu.dimension_semantics<arbitrary>], iteration_bounds = array<i64: 1, 4>, scalar_prefetch = 0 : i64, scratch_operands = 0 : i64, tpu.core_type = #tpu.core_type<tc>, window_params = [{transform_indices = @transform_0, window_bounds = array<i64: 16, 128>}, {transform_indices = @transform_1, window_bounds = array<i64: 16, 128>}, {transform_indices = @transform_2, window_bounds = array<i64: 16, 128>}]} {
    %c0_i32 = arith.constant 0 : i32
    %0 = arith.cmpi eq, %arg1, %c0_i32 : i32
    %1 = arith.extui %0 : i1 to i32
    %c0_i32_0 = arith.constant 0 : i32
    %2 = arith.cmpi ne, %1, %c0_i32_0 : i32
    scf.if %2 {
      %cst_12 = arith.constant 0.000000e+00 : f32
      %37 = vector.broadcast %cst_12 : f32 to vector<16x128xf32>
      %c0_13 = arith.constant 0 : index
      %c0_14 = arith.constant 0 : index
      %38 = vector.load %arg4[%c0_13, %c0_14] : memref<16x128xf32, #tpu.memory_space<vmem>>, vector<16x128xf32>
      tpu.vector_store %arg4[%c0_13, %c0_14], %37 {strides = array<i32>} : memref<16x128xf32, #tpu.memory_space<vmem>>, vector<16x128xf32>,
    } else {
    }
    %c0 = arith.constant 0 : index
    %c0_1 = arith.constant 0 : index
    %3 = vector.load %arg2[%c0, %c0_1] : memref<16x128xf32, #tpu.memory_space<vmem>>, vector<16x128xf32>
    %c0_2 = arith.constant 0 : index
    %c0_3 = arith.constant 0 : index
    %4 = vector.load %arg3[%c0_2, %c0_3] : memref<16x128xf32, #tpu.memory_space<vmem>>, vector<16x128xf32>
    %cst = arith.constant dense<0xFF800000> : vector<16xf32>
    %5 = vector.multi_reduction <maximumf>, %3, %cst [1] : vector<16x128xf32> to vector<16xf32>
    %6 = vector.shape_cast %5 : vector<16xf32> to vector<16x1xf32>
    %7 = vector.broadcast %6 : vector<16x1xf32> to vector<16x128xf32>
    %8 = arith.subf %3, %7 : vector<16x128xf32>
    %9 = math.exp %8 : vector<16x128xf32>
    %cst_4 = arith.constant dense<0.000000e+00> : vector<16xf32>
    %10 = vector.multi_reduction <add>, %9, %cst_4 [1] : vector<16x128xf32> to vector<16xf32>
    %11 = vector.shape_cast %10 : vector<16xf32> to vector<16x1xf32>
    %12 = math.log %11 : vector<16x1xf32>
    %13 = arith.addf %12, %6 : vector<16x1xf32>
    %14 = vector.broadcast %13 : vector<16x1xf32> to vector<16x128xf32>
    %15 = arith.subf %3, %14 : vector<16x128xf32>
    %cst_5 = arith.constant 0.000000e+00 : f32
    %16 = vector.broadcast %cst_5 : f32 to vector<16x128xf32>
    %17 = arith.cmpf ogt, %4, %16 : vector<16x128xf32>
    %cst_6 = arith.constant 1.000000e+00 : f32
    %18 = vector.broadcast %cst_6 : f32 to vector<16x128xf32>
    %19 = arith.select %17, %4, %18 : vector<16x128xi1>, vector<16x128xf32>
    %cst_7 = arith.constant 0.000000e+00 : f32
    %20 = vector.broadcast %cst_7 : f32 to vector<16x128xf32>
    %21 = arith.cmpf ogt, %4, %20 : vector<16x128xf32>
    %22 = math.log %19 : vector<16x128xf32>
    %23 = arith.subf %22, %15 : vector<16x128xf32>
    %24 = arith.mulf %4, %23 : vector<16x128xf32>
    %cst_8 = arith.constant 0.000000e+00 : f32
    %25 = vector.broadcast %cst_8 : f32 to vector<16x128xf32>
    %26 = arith.select %21, %24, %25 : vector<16x128xi1>, vector<16x128xf32>
    %c4_i32 = arith.constant 4 : i32
    %27 = arith.muli %arg0, %c4_i32 : i32
    %28 = arith.addi %27, %arg1 : i32
    %c16_i32 = arith.constant 16 : i32
    %29 = arith.muli %28, %c16_i32 : i32
    %c16_i32_9 = arith.constant 16 : i32
    %30 = arith.addi %29, %c16_i32_9 : i32
    %c50_i32 = arith.constant 50 : i32
    %31 = arith.cmpi sle, %30, %c50_i32 : i32
    %32 = arith.extui %31 : i1 to i32
    %c0_i32_10 = arith.constant 0 : i32
    %33 = arith.cmpi ne, %32, %c0_i32_10 : i32
    scf.if %33 {
      %c0_12 = arith.constant 0 : index
      %c0_13 = arith.constant 0 : index
      %37 = vector.load %arg4[%c0_12, %c0_13] : memref<16x128xf32, #tpu.memory_space<vmem>>, vector<16x128xf32>
      %38 = arith.addf %37, %26 : vector<16x128xf32>
      %c0_14 = arith.constant 0 : index
      %c0_15 = arith.constant 0 : index
      %39 = vector.load %arg4[%c0_14, %c0_15] : memref<16x128xf32, #tpu.memory_space<vmem>>, vector<16x128xf32>
      tpu.vector_store %arg4[%c0_14, %c0_15], %38 {strides = array<i32>} : memref<16x128xf32, #tpu.memory_space<vmem>>, vector<16x128xf32>,
    } else {
    }
    %true = arith.constant true
    %34 = arith.xori %31, %true : i1
    %35 = arith.extui %34 : i1 to i32
    %c0_i32_11 = arith.constant 0 : i32
    %36 = arith.cmpi ne, %35, %c0_i32_11 : i32
    scf.if %36 {
      %37 = tpu.iota {dimensions = array<i32: 0>} : vector<16x1xi32>
      %38 = vector.broadcast %29 : i32 to vector<16x1xi32>
      %39 = arith.addi %38, %37 : vector<16x1xi32>
      %c50_i32_12 = arith.constant 50 : i32
      %40 = vector.broadcast %c50_i32_12 : i32 to vector<16x1xi32>
      %41 = arith.cmpi slt, %39, %40 : vector<16x1xi32>
      %c0_13 = arith.constant 0 : index
      %c0_14 = arith.constant 0 : index
      %42 = vector.load %arg4[%c0_13, %c0_14] : memref<16x128xf32, #tpu.memory_space<vmem>>, vector<16x128xf32>
      %cst_15 = arith.constant 0.000000e+00 : f32
      %43 = vector.shape_cast %41 : vector<16x1xi1> to vector<16x1xi1>
      %44 = vector.broadcast %43 : vector<16x1xi1> to vector<16x128xi1>
      %45 = vector.broadcast %cst_15 : f32 to vector<16x128xf32>
      %46 = arith.select %44, %26, %45 : vector<16x128xi1>, vector<16x128xf32>
      %47 = arith.addf %42, %46 : vector<16x128xf32>
      %c0_16 = arith.constant 0 : index
      %c0_17 = arith.constant 0 : index
      %48 = vector.load %arg4[%c0_16, %c0_17] : memref<16x128xf32, #tpu.memory_space<vmem>>, vector<16x128xf32>
      tpu.vector_store %arg4[%c0_16, %c0_17], %47 {strides = array<i32>} : memref<16x128xf32, #tpu.memory_space<vmem>>, vector<16x128xf32>,
    } else {
    }
    return
  }
  func.func @transform_0(%arg0: i32, %arg1: i32) -> (i32, i32) {
    %c4_i32 = arith.constant 4 : i32
    %0 = arith.muli %arg0, %c4_i32 : i32
    %1 = arith.addi %0, %arg1 : i32
    %c3_i32 = arith.constant 3 : i32
    %2 = arith.minsi %1, %c3_i32 : i32
    %c0_i32 = arith.constant 0 : i32
    %c0_i32_0 = arith.constant 0 : i32
    return %2, %c0_i32 : i32, i32
  }
  func.func @transform_1(%arg0: i32, %arg1: i32) -> (i32, i32) {
    %c4_i32 = arith.constant 4 : i32
    %0 = arith.muli %arg0, %c4_i32 : i32
    %1 = arith.addi %0, %arg1 : i32
    %c3_i32 = arith.constant 3 : i32
    %2 = arith.minsi %1, %c3_i32 : i32
    %c0_i32 = arith.constant 0 : i32
    %c0_i32_0 = arith.constant 0 : i32
    return %2, %c0_i32 : i32, i32
  }
  func.func @transform_2(%arg0: i32, %arg1: i32) -> (i32, i32) {
    %c0_i32 = arith.constant 0 : i32
    %c0_i32_0 = arith.constant 0 : i32
    return %arg0, %c0_i32 : i32, i32
  }
}

</mosaic_0001>

<llo_original>
// kernel: tpu_custom_call.1
$region0: #{tpu_custom_call.1}
  #allocation0 [shape = 'u32[]', space=smem, size = 0x4, offset = 0x4, fixed_abs, tag = 'smem constant byte address 0x4 - core index']
  #allocation1 [shape = 'u32[144,128]{1,0:T(1,128)}', space=vmem, size = 0x12000, scoped, tag = 'internal scratch']
  %s0 = inlined_call_operand.hbm [shape: f32[50,128], index: 0, kind: input, shape index: {}]
  %s1 = inlined_call_operand.hbm [shape: f32[50,128], index: 1, kind: input, shape index: {}]
  %s2 = inlined_call_operand.hbm [shape: f32[16,128], index: 2, kind: output, shape index: {}]
  %s3 = sld [smem:[#allocation0]]
  $region61: #{tpu_custom_call.1} parent=0
    _
  %s5 = ssub.s32 1, %s3
  %s6 = scalar_select 0, %s5, %s3
  $region1: #{tpu_custom_call.1} parent=0
    #allocation2 [shape = 'u8[16384]{0}', space=vmem, size = 0x4000, scoped, tag = 'input window, operand 0']
    #allocation3 [shape = 's32[2]{0}', space=sflag, size = 0x8, scoped, tag = 'scoped memory for tpu_custom_call.1']
    #allocation4 [shape = 's32[2]{0}', space=sflag, size = 0x8, scoped, tag = 'scoped memory for tpu_custom_call.1']
    #allocation5 [shape = 'u8[16384]{0}', space=vmem, size = 0x4000, scoped, tag = 'input window, operand 1']
    #allocation6 [shape = 's32[2]{0}', space=sflag, size = 0x8, scoped, tag = 'scoped memory for tpu_custom_call.1']
    #allocation7 [shape = 'u8[8192]{0}', space=vmem, size = 0x2000, scoped, tag = 'output window, operand 0, single buffered']
    %7 = vsyncpa [#allocation3], 0
    %s8 = scalar_lea.sflag [#allocation3], 1
    %9 = vsyncpa %s8, 0
    %10 = vsyncpa [#allocation6], 0
    %s11 = scalar_lea.sflag [#allocation6], 1
    %12 = vsyncpa %s11, 0
    %13 = vsyncpa [#allocation4], 0
    loop: start=0, step=1, limit=6
    $region2: #{tpu_custom_call.1} parent=1 // loop_pre_header
      _
    $region3: #{tpu_custom_call.1} parent=1 // loop_header
      %s15 = sphi 0, %s19
      %p16 = scmp.ge.s32.totalorder %s15, 6
      %s22 = sphi 0, %s34
      %s23 = sphi 0, %s30
      %s24 = sphi 0, %s22
      %s25 = sphi 0, %s23
      %s26 = sphi 0, %s24
      %s27 = sphi 0, %s25
      %s45 = sphi 0, %s47
      %s48 = sphi 0, %s45
      %s49 = sphi 0, %s48
      %s65 = sphi 0, %s49
      %s79 = sphi 0, %s81
      %s82 = sphi 0, %s79
      %s83 = sphi 0, %s82
      %s99 = sphi 0, %s83
      %s105 = sphi 0, %s107
      %s108 = sphi 0, %s105
      %s109 = sphi 0, %s108
      %s125 = sphi 0, %s109
    $region4: #{tpu_custom_call.1} parent=1 // loop_header_branch
      %18 = sbr.rel (%p16) target = $region8
    $region5: #{tpu_custom_call.1} parent=1 // loop_body
      %s20 = ssub.s32 %s15, 1
      %s21 = ssub.s32 %s15, 2
      %s28 = sadd.s32 1, %s23
      %p29 = scmp.ge.s32.totalorder %s28, 4
      %s30 = scalar_select %p29, 0, %s28
      %s31 = sadd.s32 1, %s22
      %s32 = scalar_select %p29, %s31, %s22
      %p33 = scmp.ge.s32.totalorder %s32, 1
      %s34 = scalar_select %p33, 0, %s32
      %s35 = smul.u32 %s22, 4
      %s36 = sadd.s32 %s35, %s23
      %p37 = scmp.lt.s32.totalorder %s36, 3
      %s38 = scalar_select %p37, %s36, 3
      %s39 = smul.u32 %s34, 4
      %s40 = sadd.s32 %s39, %s30
      %p41 = scmp.lt.s32.totalorder %s40, 3
      %s42 = scalar_select %p41, %s40, 3
      %s43 = ssub.s32 %s38, %s42
      %p44 = scmp.eq.s32.totalorder %s43, 0
      %s46 = sadd.s32 %s45, 1
      %s47 = scalar_select %p44, %s45, %s46
      %p50 = pneg %p44
      %p51 = scmp.eq.s32.totalorder %s15, 3
      %p52 = por %p50, %p51
      %p53 = scmp.ne.s32.totalorder %s45, %s48
      %p54 = scmp.eq.s32.totalorder %s15, 0
      %p55 = por %p53, %p54
      %p56 = scmp.ne.s32.totalorder %s45, %s48
      %p57 = scmp.eq.s32.totalorder %s20, 3
      %p58 = por %p56, %p57
      %p59 = scmp.ne.s32.totalorder %s48, %s49
      %p60 = scmp.eq.s32.totalorder %s20, 0
      %p61 = por %p59, %p60
      %p62 = scmp.ne.s32.totalorder %s48, %s49
      %p63 = scmp.eq.s32.totalorder %s21, 3
      %p64 = por %p62, %p63
      %p66 = scmp.ne.s32.totalorder %s49, %s65
      %p67 = scmp.eq.s32.totalorder %s21, 0
      %p68 = por %p66, %p67
      %s69 = smul.u32 %s22, 4
      %s70 = sadd.s32 %s69, %s23
      %p71 = scmp.lt.s32.totalorder %s70, 3
      %s72 = scalar_select %p71, %s70, 3
      %s73 = smul.u32 %s34, 4
      %s74 = sadd.s32 %s73, %s30
      %p75 = scmp.lt.s32.totalorder %s74, 3
      %s76 = scalar_select %p75, %s74, 3
      %s77 = ssub.s32 %s72, %s76
      %p78 = scmp.eq.s32.totalorder %s77, 0
      %s80 = sadd.s32 %s79, 1
      %s81 = scalar_select %p78, %s79, %s80
      %p84 = pneg %p78
      %p85 = scmp.eq.s32.totalorder %s15, 3
      %p86 = por %p84, %p85
      %p87 = scmp.ne.s32.totalorder %s79, %s82
      %p88 = scmp.eq.s32.totalorder %s15, 0
      %p89 = por %p87, %p88
      %p90 = scmp.ne.s32.totalorder %s79, %s82
      %p91 = scmp.eq.s32.totalorder %s20, 3
      %p92 = por %p90, %p91
      %p93 = scmp.ne.s32.totalorder %s82, %s83
      %p94 = scmp.eq.s32.totalorder %s20, 0
      %p95 = por %p93, %p94
      %p96 = scmp.ne.s32.totalorder %s82, %s83
      %p97 = scmp.eq.s32.totalorder %s21, 3
      %p98 = por %p96, %p97
      %p100 = scmp.ne.s32.totalorder %s83, %s99
      %p101 = scmp.eq.s32.totalorder %s21, 0
      %p102 = por %p100, %p101
      %s103 = ssub.s32 %s22, %s34
      %p104 = scmp.eq.s32.totalorder %s103, 0
      %s106 = sadd.s32 %s105, 1
      %s107 = scalar_select %p104, %s105, %s106
      %p110 = pneg %p104
      %p111 = scmp.eq.s32.totalorder %s15, 3
      %p112 = por %p110, %p111
      %p113 = scmp.ne.s32.totalorder %s105, %s108
      %p114 = scmp.eq.s32.totalorder %s15, 0
      %p115 = por %p113, %p114
      %p116 = scmp.ne.s32.totalorder %s105, %s108
      %p117 = scmp.eq.s32.totalorder %s20, 3
      %p118 = por %p116, %p117
      %p119 = scmp.ne.s32.totalorder %s108, %s109
      %p120 = scmp.eq.s32.totalorder %s20, 0
      %p121 = por %p119, %p120
      %p122 = scmp.ne.s32.totalorder %s108, %s109
      %p123 = scmp.eq.s32.totalorder %s21, 3
      %p124 = por %p122, %p123
      %p126 = scmp.ne.s32.totalorder %s109, %s125
      %p127 = scmp.eq.s32.totalorder %s21, 0
      %p128 = por %p126, %p127
      %p129 = scmp.le.s32.totalorder 1, %s15
      %p130 = scmp.lt.s32.totalorder %s15, 5
      %p131 = pnand %p129, %p130
      %p132 = pneg %p131
      // Predicated region
      $region9: #{tpu_custom_call.1} parent=5 // pred_check
        _
      $region10: #{tpu_custom_call.1} parent=5 // pred_check_branch
        %134 = sbr.rel (%p131) target = $region12
      $region11: #{tpu_custom_call.1} parent=5 // pred_region
        %s135 = ssub.s32 %s15, 1
      $region12: #{tpu_custom_call.1} parent=5 // pred_fallthru
        _
      %p136 = scmp.lt.s32.totalorder %s15, 4
      // Predicated region
      $region13: #{tpu_custom_call.1} parent=5 // pred_check
        %p137 = pneg %p136
      $region14: #{tpu_custom_call.1} parent=5 // pred_check_branch
        %139 = sbr.rel (%p137) target = $region16
      $region15: #{tpu_custom_call.1} parent=5 // pred_region
        // Predicated region
        $region17: #{tpu_custom_call.1} parent=15 // pred_check
          %p140 = pneg %p55
        $region18: #{tpu_custom_call.1} parent=15 // pred_check_branch
          %142 = sbr.rel (%p140) target = $region20
        $region19: #{tpu_custom_call.1} parent=15 // pred_region
          %s143 = sand.u32 %s45, 1
          %s144 = scalar_lea.sflag [#allocation3], %s143
          %s145 = sand.u32 %s45, 1
          %s146 = smul.addr %s145, 16
          %s147 = scalar_lea.vmem [#allocation2], %s146
          %s148 = smul.u32 %s22, 4
          %s149 = sadd.s32 %s148, %s23
          %p150 = scmp.lt.s32.totalorder %s149, 3
          %s151 = scalar_select %p150, %s149, 3
          %s152 = smul.u32 2, %s151
          %s153 = ssub.s32 7, %s152
          %p154 = scmp.lt.s32.totalorder %s153, 2
          %s155 = scalar_select %p154, %s153, 2
          %s156 = smul.u32 128, %s155
          %s158 = ssub.s32 256, %s156
          %159 = vsyncadd %s144, %s158
          %p160 = scmp.ne.s32.totalorder 0, %s156
          %s161 = smul.addr %s152, 128
          %s162 = scalar_lea.hbm %s0, %s161
          %s163 = smul.u32 8, %s155
          %s164 = sshll.u32 %s147, 4
          %s165 = int_to_ptr.vmem [resolvable:$true] %s164
          %s166 = sshll.u32 %s163, 4
          %170 = dma.hbm_to_vmem [thread:$0]  (%p160), %s162, %s166, %s165, %s144, 128, 128, 8
        $region20: #{tpu_custom_call.1} parent=15 // pred_fallthru
          _
        // Predicated region
        $region21: #{tpu_custom_call.1} parent=15 // pred_check
          %p171 = pneg %p89
        $region22: #{tpu_custom_call.1} parent=15 // pred_check_branch
          %173 = sbr.rel (%p171) target = $region24
        $region23: #{tpu_custom_call.1} parent=15 // pred_region
          %s174 = sand.u32 %s79, 1
          %s175 = scalar_lea.sflag [#allocation6], %s174
          %s176 = sand.u32 %s79, 1
          %s177 = smul.addr %s176, 16
          %s178 = scalar_lea.vmem [#allocation5], %s177
          %s179 = smul.u32 %s22, 4
          %s180 = sadd.s32 %s179, %s23
          %p181 = scmp.lt.s32.totalorder %s180, 3
          %s182 = scalar_select %p181, %s180, 3
          %s183 = smul.u32 2, %s182
          %s184 = ssub.s32 7, %s183
          %p185 = scmp.lt.s32.totalorder %s184, 2
          %s186 = scalar_select %p185, %s184, 2
          %s187 = smul.u32 128, %s186
          %s189 = ssub.s32 256, %s187
          %190 = vsyncadd %s175, %s189
          %p191 = scmp.ne.s32.totalorder 0, %s187
          %s192 = smul.addr %s183, 128
          %s193 = scalar_lea.hbm %s1, %s192
          %s194 = smul.u32 8, %s186
          %s195 = sshll.u32 %s178, 4
          %s196 = int_to_ptr.vmem [resolvable:$true] %s195
          %s197 = sshll.u32 %s194, 4
          %201 = dma.hbm_to_vmem [thread:$0]  (%p191), %s193, %s197, %s196, %s175, 128, 128, 8
        $region24: #{tpu_custom_call.1} parent=15 // pred_fallthru
          _
      $region16: #{tpu_custom_call.1} parent=5 // pred_fallthru
        _
      %p202 = scmp.le.s32.totalorder 1, %s15
      %p203 = scmp.lt.s32.totalorder %s15, 5
      %p204 = pnand %p202, %p203
      %p205 = pneg %p204
      // Predicated region
      $region25: #{tpu_custom_call.1} parent=5 // pred_check
        _
      $region26: #{tpu_custom_call.1} parent=5 // pred_check_branch
        %207 = sbr.rel (%p204) target = $region28
      $region27: #{tpu_custom_call.1} parent=5 // pred_region
        %s208 = ssub.s32 %s15, 1
        %s209 = sand.u32 %s48, 1
        %s210 = scalar_lea.sflag [#allocation3], %s209
        %s211 = sand.u32 %s48, 1
        %s212 = smul.addr %s211, 16
        %s213 = scalar_lea.vmem [#allocation2], %s212
        // Predicated region
        $region29: #{tpu_custom_call.1} parent=27 // pred_check
          %p214 = pneg %p61
        $region30: #{tpu_custom_call.1} parent=27 // pred_check_branch
          %216 = sbr.rel (%p214) target = $region32
        $region31: #{tpu_custom_call.1} parent=27 // pred_region
          %217 = dma.done %s210, 256
        $region32: #{tpu_custom_call.1} parent=27 // pred_fallthru
          _
        %s218 = sand.u32 %s82, 1
        %s219 = scalar_lea.sflag [#allocation6], %s218
        %s220 = sand.u32 %s82, 1
        %s221 = smul.addr %s220, 16
        %s222 = scalar_lea.vmem [#allocation5], %s221
        // Predicated region
        $region33: #{tpu_custom_call.1} parent=27 // pred_check
          %p223 = pneg %p95
        $region34: #{tpu_custom_call.1} parent=27 // pred_check_branch
          %225 = sbr.rel (%p223) target = $region36
        $region35: #{tpu_custom_call.1} parent=27 // pred_region
          %226 = dma.done %s219, 256
        $region36: #{tpu_custom_call.1} parent=27 // pred_fallthru
          _
        %s227 = sand.u32 %s48, 1
        %s228 = scalar_lea.sflag [#allocation3], %s227
        %s229 = sand.u32 %s48, 1
        %s230 = smul.addr %s229, 16
        %s231 = scalar_lea.vmem [#allocation2], %s230
        %p232 = pneg %p61
        %p233 = pneg %p58
        %s234 = sand.u32 %s82, 1
        %s235 = scalar_lea.sflag [#allocation6], %s234
        %s236 = sand.u32 %s82, 1
        %s237 = smul.addr %s236, 16
        %s238 = scalar_lea.vmem [#allocation5], %s237
        %p239 = pneg %p95
        %p240 = pneg %p92
        %p241 = pneg %p121
        %p242 = pneg %p118
        %s243 = smul.u32 %s24, 4
        %s244 = sadd.s32 %s243, %s25
        %p245 = scmp.lt.s32.totalorder %s244, 3
        %s246 = scalar_select %p245, %s244, 3
        %s247 = smul.u32 2, %s246
        %s248 = ssub.s32 7, %s247
        %p249 = scmp.lt.s32.totalorder %s248, 2
        %s250 = scalar_select %p249, %s248, 2
        %s251 = smul.u32 128, %s250
        %s252 = smul.u32 %s24, 4
        %s253 = sadd.s32 %s252, %s25
        %p254 = scmp.lt.s32.totalorder %s253, 3
        %s255 = scalar_select %p254, %s253, 3
        %s256 = smul.u32 2, %s255
        %s257 = ssub.s32 7, %s256
        %p258 = scmp.lt.s32.totalorder %s257, 2
        %s259 = scalar_select %p258, %s257, 2
        %s260 = smul.u32 128, %s259
        %s261 = smul.u32 2, %s24
        %p262 = scmp.eq.s32.totalorder %s25, 0
        // Predicated region
        $region37: #{tpu_custom_call.1} parent=27 // pred_check
          %p263 = pneg %p262
        $region38: #{tpu_custom_call.1} parent=27 // pred_check_branch
          %265 = sbr.rel (%p263) target = $region40
        $region39: #{tpu_custom_call.1} parent=27 // pred_region
          %266 = vst [vmem:[#allocation7] sm:$0xff] 0.0
          %267 = vst [vmem:[#allocation7 + $0x8] sm:$0xff] 0.0
        $region40: #{tpu_custom_call.1} parent=27 // pred_fallthru
          _
        %v268 = vld [vmem:[%s213] sm:$0xff]
        %v269 = vld [vmem:[%s213 + $0x8] sm:$0xff]
        %v270 = vld [vmem:[%s222] sm:$0xff]
        %v271 = vld [vmem:[%s222 + $0x8] sm:$0xff]
        %272 = vmax.xlane.f32.xlu0 %v268
        %v273 = vpop.xlane.xlu0 %272
        %274 = vmax.xlane.f32.xlu0 %v269
        %v275 = vpop.xlane.xlu0 %274
        %v276 = vsub.f32 %v268, %v273
        %v277 = vsub.f32 %v269, %v275
        %v278 = vmul.f32 %v276, 1.442695
        %v279 = vpow.pop %v278
        %v280 = vmul.f32 %v277, 1.442695
        %v281 = vpow.pop %v280
        %282 = vadd.xlane.f32.xlu0 %v279
        %v283 = vpop.xlane.xlu0 %282
        %284 = vadd.xlane.f32.xlu0 %v281
        %v285 = vpop.xlane.xlu0 %284
        %v286 = vlog2.pop %v283
        %v287 = vmul.f32 %v286, 0.6931472
        %v288 = vlog2.pop %v285
        %v289 = vmul.f32 %v288, 0.6931472
        %v290 = vadd.f32 %v287, %v273
        %v291 = vadd.f32 %v289, %v275
        %v292 = vsub.f32 %v268, %v290
        %v293 = vsub.f32 %v269, %v291
        %vm294 = vcmp.gt.f32.partialorder %v270, 0.0
        %vm295 = vcmp.gt.f32.partialorder %v271, 0.0
        %v296 = vsel %vm294, %v270, 1.0
        %v297 = vsel %vm295, %v271, 1.0
        %v298 = vlog2.pop %v296
        %v299 = vmul.f32 %v298, 0.6931472
        %v300 = vlog2.pop %v297
        %v301 = vmul.f32 %v300, 0.6931472
        %v302 = vsub.f32 %v299, %v292
        %v303 = vsub.f32 %v301, %v293
        %v304 = vmul.f32 %v270, %v302
        %v305 = vmul.f32 %v271, %v303
        %v306 = vsel %vm294, %v304, 0.0
        %v307 = vsel %vm295, %v305, 0.0
        %s308 = smul.u32 %s24, 4
        %s309 = sadd.s32 %s308, %s25
        %s310 = smul.u32 %s309, 16
        %s311 = sadd.s32 %s310, 16
        %p312 = scmp.le.s32.totalorder %s311, 50
        // Predicated region
        $region41: #{tpu_custom_call.1} parent=27 // pred_check
          %p313 = pneg %p312
        $region42: #{tpu_custom_call.1} parent=27 // pred_check_branch
          %315 = sbr.rel (%p313) target = $region44
        $region43: #{tpu_custom_call.1} parent=27 // pred_region
          %v316 = vld [vmem:[#allocation7] sm:$0xff]
          %v317 = vld [vmem:[#allocation7 + $0x8] sm:$0xff]
          %v318 = vadd.f32 %v316, %v306
          %v319 = vadd.f32 %v317, %v307
          %320 = vst [vmem:[#allocation7] sm:$0xff] %v318
          %321 = vst [vmem:[#allocation7 + $0x8] sm:$0xff] %v319
        $region44: #{tpu_custom_call.1} parent=27 // pred_fallthru
          _
        %p322 = scmp.gt.s32.totalorder %s311, 50
        // Predicated region
        $region45: #{tpu_custom_call.1} parent=27 // pred_check
          %p323 = pneg %p322
        $region46: #{tpu_custom_call.1} parent=27 // pred_check_branch
          %325 = sbr.rel (%p323) target = $region48
        $region47: #{tpu_custom_call.1} parent=27 // pred_region
          %v326 = vlaneseq
          %v327 = vshrl.u32 %v326, 7
          %v328 = vadd.s32 %v327, 8
          %v329 = vstv %s310
          %v330 = vadd.s32 %v329, %v327
          %v331 = vadd.s32 %v329, %v328
          %vm332 = vcmp.lt.s32.totalorder %v330, 50
          %vm333 = vcmp.lt.s32.totalorder %v331, 50
          %v334 = vld [vmem:[#allocation7] sm:$0xff]
          %v335 = vld [vmem:[#allocation7 + $0x8] sm:$0xff]
          %v336 = vsel %vm332, 1, 0
          %v337 = vsel %vm333, 1, 0
          %vm338 = vcmp.eq.s32.totalorder %v336, 1
          %vm339 = vcmp.eq.s32.totalorder %v337, 1
          %v340 = vsel %vm338, %v306, 0.0
          %v341 = vsel %vm339, %v307, 0.0
          %v342 = vadd.f32 %v334, %v340
          %v343 = vadd.f32 %v335, %v341
          %344 = vst [vmem:[#allocation7] sm:$0xff] %v342
          %345 = vst [vmem:[#allocation7 + $0x8] sm:$0xff] %v343
        $region48: #{tpu_custom_call.1} parent=27 // pred_fallthru
          _
        // Predicated region
        $region49: #{tpu_custom_call.1} parent=27 // pred_check
          %p346 = pneg %p118
        $region50: #{tpu_custom_call.1} parent=27 // pred_check_branch
          %348 = sbr.rel (%p346) target = $region52
        $region51: #{tpu_custom_call.1} parent=27 // pred_region
          %s349 = smul.u32 2, %s24
          %s351 = ssub.s32 256, 256
          %352 = vsyncadd [#allocation4], %s351
          %s353 = smul.addr %s349, 128
          %s354 = scalar_lea.hbm %s2, %s353
          %s355 = sshll.u32 [#allocation7], 4
          %s356 = int_to_ptr.vmem [resolvable:$true] %s355
          %361 = dma.vmem_to_hbm [thread:$0]  %s356, 256, %s354, [#allocation4], 128, 128, 8
        $region52: #{tpu_custom_call.1} parent=27 // pred_fallthru
          _
        // Predicated region
        $region53: #{tpu_custom_call.1} parent=27 // pred_check
          %p362 = pneg %p118
        $region54: #{tpu_custom_call.1} parent=27 // pred_check_branch
          %364 = sbr.rel (%p362) target = $region56
        $region55: #{tpu_custom_call.1} parent=27 // pred_region
          %365 = dma.done [#allocation4], 256
        $region56: #{tpu_custom_call.1} parent=27 // pred_fallthru
          _
      $region28: #{tpu_custom_call.1} parent=5 // pred_fallthru
        _
      %p366 = scmp.le.s32.totalorder 2, %s15
      // Predicated region
      $region57: #{tpu_custom_call.1} parent=5 // pred_check
        %p367 = pneg %p366
      $region58: #{tpu_custom_call.1} parent=5 // pred_check_branch
        %369 = sbr.rel (%p367) target = $region60
      $region59: #{tpu_custom_call.1} parent=5 // pred_region
        %s370 = ssub.s32 %s15, 2
      $region60: #{tpu_custom_call.1} parent=5 // pred_fallthru
        _
    $region6: #{tpu_custom_call.1} parent=1 // loop_footer
      %s19 = sadd.s32 1, %s15
    $region7: #{tpu_custom_call.1} parent=1 // loop_footer_branch
      %14 = sbr.rel target = $region3
    $region8: #{tpu_custom_call.1} parent=1 // loop_exit
      _
    %371 = vsyncpa [#allocation3], 1
    %s372 = scalar_lea.sflag [#allocation3], 1
    %373 = vsyncpa %s372, 1
    %374 = vsyncpa [#allocation6], 1
    %s375 = scalar_lea.sflag [#allocation6], 1
    %376 = vsyncpa %s375, 1
    %377 = vsyncpa [#allocation4], 1
    %s378 = scalar_lea.sflag [#allocation4], 1
    %379 = vsyncpa %s378, 1

</llo_original>
